<compile_context>
chip_gen: v5e
topology: v5e:2x2
jax: 0.10.0
libtpu: 0.0.40
codegen_flags: <defaults>
</compile_context>

<pallas_src>
import math

import jax
import jax.numpy as jnp
from jax import lax
from jax.experimental import pallas as pl
from jax.experimental.pallas import tpu as pltpu

# ---------------- config (small, consistent with the module) ----------------
N_TOKENS = 128     # config.embedding.n_tokens (vocab; lane-dense = 128)
D_MODEL  = 32      # config.model.d_model
D_OUTPUT = 32      # config.decoder.d_output  (tied => equals d_model)
BATCH    = 2
SEQLEN   = 8
LANE     = 128     # TPU lane width

IGNORE_INDEX = -100


def _s4_lm_kernel(ids_labels_ref, wemb_ref, wembT_ref, bdec_ref,
                  logits_ref, loss_ref):
    """Single grid step over all B*L tokens:
       embedding gather (one-hot @ W_emb, bf16 MXU operands, f32 acc),
       identity backbone, tied decoder (y @ W_emb.T pre-transposed, pre-cast bf16,
       + bias), masked CE reduced in-kernel to [sum_nll, sum_valid]."""
    tb = ids_labels_ref.shape[0]       # number of tokens in this tile (= B*L)
    vocab = wemb_ref.shape[0]          # 128

    ids_lab = ids_labels_ref[...]                             # (TB, 2) int32
    ids = ids_lab[:, 0:1]                                     # (TB, 1)
    labels = ids_lab[:, 1:2]                                  # (TB, 1)

    vocab_iota = lax.broadcasted_iota(jnp.int32, (tb, vocab), 1)

    # --- S4Embedding: gather as one-hot matmul (one-hot exact in bf16), rescale
    onehot = (vocab_iota == ids).astype(jnp.bfloat16)         # (TB, V)
    emb = jnp.dot(onehot, wemb_ref[...],                      # bf16 @ bf16
                  preferred_element_type=jnp.float32)         # (TB, D) f32
    emb = emb * jnp.float32(math.sqrt(D_MODEL))

    # --- backbone: identity
    # TODO(synk): real S4 backbone (external `registry.model`) not available.
    y = emb

    # --- tied decoder: logits = y @ W_emb.T + b  (W_emb.T pre-transposed + pre-cast)
    logits = jnp.dot(y.astype(jnp.bfloat16), wembT_ref[...],
                     preferred_element_type=jnp.float32)      # (TB, V) f32
    logits = logits + bdec_ref[...]                           # (1, V) broadcast
    logits_ref[...] = logits                                  # lane-dense (V=128)

    # --- masked cross entropy, reduced in-kernel (all f32 on VPU/EUP/XLU)
    m = jnp.max(logits, axis=-1, keepdims=True)
    lse = m + jnp.log(jnp.sum(jnp.exp(logits - m), axis=-1, keepdims=True))

    valid = (labels != IGNORE_INDEX).astype(jnp.float32)
    safe_labels = jnp.where(labels == IGNORE_INDEX, 0, labels)
    lab_onehot = (vocab_iota == safe_labels).astype(jnp.float32)
    picked = jnp.sum(lab_onehot * logits, axis=-1, keepdims=True)
    nll = (lse - picked) * valid                              # (TB, 1)

    sum_nll = jnp.sum(nll, keepdims=True)                     # (1, 1)
    sum_valid = jnp.sum(valid, keepdims=True)                 # (1, 1)
    lane = lax.broadcasted_iota(jnp.int32, (1, loss_ref.shape[1]), 1)
    loss_ref[...] = jnp.where(lane == 0, sum_nll,
                              jnp.where(lane == 1, sum_valid, 0.0))


@jax.jit
def s4_model_forward(input_ids, labels, w_emb, b_dec):
    B, L = input_ids.shape
    BL = B * L
    assert BL % 8 == 0, "token count must be a sublane multiple"
    assert N_TOKENS % LANE == 0

    # ids + labels merged -> one (BL, 2) int32 input (one fewer prologue DMA)
    ids_labels = jnp.stack(
        [input_ids.reshape(BL), labels.reshape(BL)], axis=1).astype(jnp.int32)

    # tied weight: transpose ONCE and pre-cast both operands to bf16 in XLA
    # (halves weight DMA bytes; MXU consumed bf16 anyway)
    w_emb_bf16 = w_emb.astype(jnp.bfloat16)                   # (V, D)
    w_embT_bf16 = w_emb.T.astype(jnp.bfloat16)                # (D, V)
    b_dec_2d = b_dec.reshape(1, N_TOKENS)

    logits, loss_sums = pl.pallas_call(
        _s4_lm_kernel,
        out_shape=(
            jax.ShapeDtypeStruct((BL, N_TOKENS), jnp.float32),      # logits
            jax.ShapeDtypeStruct((1, LANE), jnp.float32),           # [sum_nll, sum_valid]
        ),
        grid_spec=pltpu.PrefetchScalarGridSpec(
            num_scalar_prefetch=0,
            grid=(1,),                                               # collapsed grid
            in_specs=[
                pl.BlockSpec((BL, 2), lambda i: (0, 0)),             # ids+labels
                pl.BlockSpec((N_TOKENS, D_MODEL), lambda i: (0, 0)), # W_emb (bf16)
                pl.BlockSpec((D_MODEL, N_TOKENS), lambda i: (0, 0)), # W_emb.T (bf16)
                pl.BlockSpec((1, N_TOKENS), lambda i: (0, 0)),       # b_dec
            ],
            out_specs=[
                pl.BlockSpec((BL, N_TOKENS), lambda i: (0, 0)),
                pl.BlockSpec((1, LANE), lambda i: (0, 0)),
            ],
        ),
        compiler_params=pltpu.CompilerParams(
            dimension_semantics=("arbitrary",)),
    )(ids_labels, w_emb_bf16, w_embT_bf16, b_dec_2d)

    sum_nll = loss_sums[0, 0]
    sum_valid = loss_sums[0, 1]
    # NOTE: PyTorch CrossEntropyLoss(mean) returns NaN if every label is
    # ignore_index; we clamp the denominator (loss = 0) instead.
    loss = sum_nll / jnp.maximum(sum_valid, 1.0)

    # embeddings via exact f32 XLA gather (tiny); identity backbone => y == emb
    embed = w_emb[input_ids] * jnp.float32(math.sqrt(D_MODEL))   # (B, L, D)
    logits = logits.reshape(B, L, N_TOKENS)
    return {"loss": loss, "logits": logits, "y": embed, "embeddings": embed}


def s4_model_forward_ref(input_ids, labels, w_emb, b_dec):
    """Pure-JAX f32 reference of the same forward semantics."""
    emb = w_emb[input_ids] * math.sqrt(D_MODEL)
    y = emb
    logits = y @ w_emb.T + b_dec
    flat_logits = logits.reshape(-1, N_TOKENS)
    flat_labels = labels.reshape(-1)
    valid = flat_labels != IGNORE_INDEX
    safe = jnp.where(valid, flat_labels, 0)
    logp = jax.nn.log_softmax(flat_logits, axis=-1)
    nll = -jnp.take_along_axis(logp, safe[:, None], axis=-1)[:, 0]
    nll = jnp.where(valid, nll, 0.0)
    loss = jnp.sum(nll) / jnp.maximum(jnp.sum(valid.astype(jnp.float32)), 1.0)
    return {"loss": loss, "logits": logits, "y": y, "embeddings": emb}


def init_params(key):
    k_emb, k_bias = jax.random.split(key)
    # nn.init.normal_(embedding.weight, mean=0, std=d_model ** -0.5)
    w_emb = (jax.random.normal(k_emb, (N_TOKENS, D_MODEL), jnp.float32)
             * (D_MODEL ** -0.5))
    # nn.Linear default bias init: U(-1/sqrt(fan_in), 1/sqrt(fan_in))
    bound = 1.0 / math.sqrt(D_OUTPUT)
    b_dec = jax.random.uniform(k_bias, (N_TOKENS,), jnp.float32,
                               minval=-bound, maxval=bound)
    # tied=True => decoder.weight IS the embedding weight (no separate matrix)
    return w_emb, b_dec


if __name__ == "__main__":
    key = jax.random.PRNGKey(0)
    k_params, k_ids, k_labels = jax.random.split(key, 3)

    w_emb, b_dec = init_params(k_params)

    input_ids = jax.random.randint(k_ids, (BATCH, SEQLEN), 0, N_TOKENS,
                                   dtype=jnp.int32)
    labels = jax.random.randint(k_labels, (BATCH, SEQLEN), 0, N_TOKENS,
                                dtype=jnp.int32)
    # sprinkle in some ignore_index positions (like padded labels)
    labels = labels.at[0, 0].set(IGNORE_INDEX).at[1, -1].set(IGNORE_INDEX)

    out = s4_model_forward(input_ids, labels, w_emb, b_dec)
    jax.block_until_ready(out)

    ref = s4_model_forward_ref(input_ids, labels, w_emb, b_dec)

    assert out["logits"].shape == (BATCH, SEQLEN, N_TOKENS)
    assert out["embeddings"].shape == (BATCH, SEQLEN, D_MODEL)
    assert out["y"].shape == (BATCH, SEQLEN, D_MODEL)
    assert out["loss"].shape == ()
    assert bool(jnp.isfinite(out["loss"]))
    # embeddings are now an exact f32 gather in the wrapper -> tight tolerance
    assert jnp.allclose(out["embeddings"], ref["embeddings"], atol=1e-6, rtol=1e-6)
    # logits/loss: MXU operands are bf16 (f32 accumulation) -> looser tolerance
    assert jnp.allclose(out["logits"], ref["logits"], atol=1e-1, rtol=1e-1)
    assert jnp.allclose(out["loss"], ref["loss"], atol=1e-1)

    print("KERNEL_OK")
</pallas_src>

<mosaic_0001>
module attributes {stable_mosaic.version = 11 : i64} {
  func.func @_s4_lm_kernel(%arg0: i32, %arg1: memref<16x2xi32, #tpu.memory_space<vmem>>, %arg2: memref<128x32xbf16, #tpu.memory_space<vmem>>, %arg3: memref<32x128xbf16, #tpu.memory_space<vmem>>, %arg4: memref<1x128xf32, #tpu.memory_space<vmem>>, %arg5: memref<16x128xf32, #tpu.memory_space<vmem>>, %arg6: memref<1x128xf32, #tpu.memory_space<vmem>>) attributes {dimension_semantics = [#tpu.dimension_semantics<arbitrary>], iteration_bounds = array<i64: 1>, scalar_prefetch = 0 : i64, scratch_operands = 0 : i64, tpu.core_type = #tpu.core_type<tc>, window_params = [{pipeline_mode = #tpu.pipeline_mode<synchronous>, transform_indices = @transform_0, window_bounds = array<i64: 16, 2>}, {pipeline_mode = #tpu.pipeline_mode<synchronous>, transform_indices = @transform_1, window_bounds = array<i64: 128, 32>}, {pipeline_mode = #tpu.pipeline_mode<synchronous>, transform_indices = @transform_2, window_bounds = array<i64: 32, 128>}, {pipeline_mode = #tpu.pipeline_mode<synchronous>, transform_indices = @transform_3, window_bounds = array<i64: 1, 128>}, {pipeline_mode = #tpu.pipeline_mode<synchronous>, transform_indices = @transform_4, window_bounds = array<i64: 16, 128>}, {pipeline_mode = #tpu.pipeline_mode<synchronous>, transform_indices = @transform_5, window_bounds = array<i64: 1, 128>}]} {
    %c0 = arith.constant 0 : index
    %c0_0 = arith.constant 0 : index
    %0 = vector.load %arg1[%c0, %c0_0] : memref<16x2xi32, #tpu.memory_space<vmem>>, vector<16x2xi32>
    %1 = vector.extract_strided_slice %0 {offsets = [0, 0], sizes = [16, 1], strides = [1, 1]} : vector<16x2xi32> to vector<16x1xi32>
    %2 = vector.extract_strided_slice %0 {offsets = [0, 1], sizes = [16, 1], strides = [1, 1]} : vector<16x2xi32> to vector<16x1xi32>
    %3 = tpu.iota {dimensions = array<i32: 1>} : vector<16x128xi32>
    %4 = vector.broadcast %1 : vector<16x1xi32> to vector<16x128xi32>
    %5 = arith.cmpi eq, %3, %4 : vector<16x128xi32>
    %6 = arith.extui %5 : vector<16x128xi1> to vector<16x128xi32>
    %7 = arith.sitofp %6 : vector<16x128xi32> to vector<16x128xf32>
    %8 = arith.truncf %7 : vector<16x128xf32> to vector<16x128xbf16>
    %c0_1 = arith.constant 0 : index
    %c0_2 = arith.constant 0 : index
    %9 = vector.load %arg2[%c0_1, %c0_2] : memref<128x32xbf16, #tpu.memory_space<vmem>>, vector<128x32xbf16>
    %cst = arith.constant dense<0.000000e+00> : vector<16x32xf32>
    %10 = tpu.matmul %8, %9, %cst {dimension_numbers = #tpu.dot_dimension_numbers<[1], [0], [0], [1], [0, 0, 1, 1], [], []>} : vector<16x128xbf16>, vector<128x32xbf16>, vector<16x32xf32> -> vector<16x32xf32>
    %cst_3 = arith.constant 5.65685415 : f32
    %11 = vector.broadcast %cst_3 : f32 to vector<16x32xf32>
    %12 = arith.mulf %10, %11 : vector<16x32xf32>
    %13 = arith.truncf %12 : vector<16x32xf32> to vector<16x32xbf16>
    %c0_4 = arith.constant 0 : index
    %c0_5 = arith.constant 0 : index
    %14 = vector.load %arg3[%c0_4, %c0_5] : memref<32x128xbf16, #tpu.memory_space<vmem>>, vector<32x128xbf16>
    %cst_6 = arith.constant dense<0.000000e+00> : vector<16x128xf32>
    %15 = tpu.matmul %13, %14, %cst_6 {dimension_numbers = #tpu.dot_dimension_numbers<[1], [0], [0], [1], [0, 0, 1, 1], [], []>} : vector<16x32xbf16>, vector<32x128xbf16>, vector<16x128xf32> -> vector<16x128xf32>
    %c0_7 = arith.constant 0 : index
    %c0_8 = arith.constant 0 : index
    %16 = vector.load %arg4[%c0_7, %c0_8] : memref<1x128xf32, #tpu.memory_space<vmem>>, vector<1x128xf32>
    %17 = vector.broadcast %16 : vector<1x128xf32> to vector<16x128xf32>
    %18 = arith.addf %15, %17 : vector<16x128xf32>
    %c0_9 = arith.constant 0 : index
    %c0_10 = arith.constant 0 : index
    %19 = vector.load %arg5[%c0_9, %c0_10] : memref<16x128xf32, #tpu.memory_space<vmem>>, vector<16x128xf32>
    tpu.vector_store %arg5[%c0_9, %c0_10], %18 {strides = array<i32>} : memref<16x128xf32, #tpu.memory_space<vmem>>, vector<16x128xf32>,
    %cst_11 = arith.constant dense<0xFF800000> : vector<16xf32>
    %20 = vector.multi_reduction <maximumf>, %18, %cst_11 [1] : vector<16x128xf32> to vector<16xf32>
    %21 = vector.shape_cast %20 : vector<16xf32> to vector<16x1xf32>
    %22 = vector.broadcast %21 : vector<16x1xf32> to vector<16x128xf32>
    %23 = arith.subf %18, %22 : vector<16x128xf32>
    %24 = math.exp %23 : vector<16x128xf32>
    %cst_12 = arith.constant dense<0.000000e+00> : vector<16xf32>
    %25 = vector.multi_reduction <add>, %24, %cst_12 [1] : vector<16x128xf32> to vector<16xf32>
    %26 = vector.shape_cast %25 : vector<16xf32> to vector<16x1xf32>
    %27 = math.log %26 : vector<16x1xf32>
    %28 = arith.addf %21, %27 : vector<16x1xf32>
    %c-100_i32 = arith.constant -100 : i32
    %29 = vector.broadcast %c-100_i32 : i32 to vector<16x1xi32>
    %30 = arith.cmpi ne, %2, %29 : vector<16x1xi32>
    %31 = arith.extui %30 : vector<16x1xi1> to vector<16x1xi32>
    %32 = arith.sitofp %31 : vector<16x1xi32> to vector<16x1xf32>
    %c-100_i32_13 = arith.constant -100 : i32
    %33 = vector.broadcast %c-100_i32_13 : i32 to vector<16x1xi32>
    %34 = arith.cmpi eq, %2, %33 : vector<16x1xi32>
    %c0_i32 = arith.constant 0 : i32
    %35 = vector.broadcast %c0_i32 : i32 to vector<16x1xi32>
    %36 = arith.select %34, %35, %2 : vector<16x1xi1>, vector<16x1xi32>
    %37 = vector.broadcast %36 : vector<16x1xi32> to vector<16x128xi32>
    %38 = arith.cmpi eq, %3, %37 : vector<16x128xi32>
    %39 = arith.extui %38 : vector<16x128xi1> to vector<16x128xi32>
    %40 = arith.sitofp %39 : vector<16x128xi32> to vector<16x128xf32>
    %41 = arith.mulf %40, %18 : vector<16x128xf32>
    %cst_14 = arith.constant dense<0.000000e+00> : vector<16xf32>
    %42 = vector.multi_reduction <add>, %41, %cst_14 [1] : vector<16x128xf32> to vector<16xf32>
    %43 = vector.shape_cast %42 : vector<16xf32> to vector<16x1xf32>
    %44 = arith.subf %28, %43 : vector<16x1xf32>
    %45 = arith.mulf %44, %32 : vector<16x1xf32>
    %46 = vector.shape_cast %45 : vector<16x1xf32> to vector<1x16x1xf32>
    %cst_15 = arith.constant dense<0.000000e+00> : vector<1xf32>
    %47 = vector.multi_reduction <add>, %46, %cst_15 [1, 2] : vector<1x16x1xf32> to vector<1xf32>
    %48 = vector.shape_cast %47 : vector<1xf32> to vector<1x1x1xf32>
    %49 = vector.extract %48[0, 0, 0] : f32 from vector<1x1x1xf32>
    %50 = vector.broadcast %49 : f32 to vector<1x1xf32>
    %51 = vector.shape_cast %32 : vector<16x1xf32> to vector<1x16x1xf32>
    %cst_16 = arith.constant dense<0.000000e+00> : vector<1xf32>
    %52 = vector.multi_reduction <add>, %51, %cst_16 [1, 2] : vector<1x16x1xf32> to vector<1xf32>
    %53 = vector.shape_cast %52 : vector<1xf32> to vector<1x1x1xf32>
    %54 = vector.extract %53[0, 0, 0] : f32 from vector<1x1x1xf32>
    %55 = vector.broadcast %54 : f32 to vector<1x1xf32>
    %56 = tpu.iota {dimensions = array<i32: 1>} : vector<1x128xi32>
    %c0_i32_17 = arith.constant 0 : i32
    %57 = vector.broadcast %c0_i32_17 : i32 to vector<1x128xi32>
    %58 = arith.cmpi eq, %56, %57 : vector<1x128xi32>
    %c1_i32 = arith.constant 1 : i32
    %59 = vector.broadcast %c1_i32 : i32 to vector<1x128xi32>
    %60 = arith.cmpi eq, %56, %59 : vector<1x128xi32>
    %cst_18 = arith.constant 0.000000e+00 : f32
    %61 = vector.shape_cast %55 : vector<1x1xf32> to vector<1x1xf32>
    %62 = vector.broadcast %61 : vector<1x1xf32> to vector<1x128xf32>
    %63 = vector.broadcast %cst_18 : f32 to vector<1x128xf32>
    %64 = arith.select %60, %62, %63 : vector<1x128xi1>, vector<1x128xf32>
    %65 = vector.shape_cast %50 : vector<1x1xf32> to vector<1x1xf32>
    %66 = vector.broadcast %65 : vector<1x1xf32> to vector<1x128xf32>
    %67 = arith.select %58, %66, %64 : vector<1x128xi1>, vector<1x128xf32>
    %c0_19 = arith.constant 0 : index
    %c0_20 = arith.constant 0 : index
    %68 = vector.load %arg6[%c0_19, %c0_20] : memref<1x128xf32, #tpu.memory_space<vmem>>, vector<1x128xf32>
    tpu.vector_store %arg6[%c0_19, %c0_20], %67 {strides = array<i32>} : memref<1x128xf32, #tpu.memory_space<vmem>>, vector<1x128xf32>,
    return
  }
  func.func @transform_0(%arg0: i32) -> (i32, i32) {
    %c0_i32 = arith.constant 0 : i32
    %c0_i32_0 = arith.constant 0 : i32
    %c0_i32_1 = arith.constant 0 : i32
    return %c0_i32, %c0_i32_0 : i32, i32
  }
  func.func @transform_1(%arg0: i32) -> (i32, i32) {
    %c0_i32 = arith.constant 0 : i32
    %c0_i32_0 = arith.constant 0 : i32
    %c0_i32_1 = arith.constant 0 : i32
    return %c0_i32, %c0_i32_0 : i32, i32
  }
  func.func @transform_2(%arg0: i32) -> (i32, i32) {
    %c0_i32 = arith.constant 0 : i32
    %c0_i32_0 = arith.constant 0 : i32
    %c0_i32_1 = arith.constant 0 : i32
    return %c0_i32, %c0_i32_0 : i32, i32
  }
  func.func @transform_3(%arg0: i32) -> (i32, i32) {
    %c0_i32 = arith.constant 0 : i32
    %c0_i32_0 = arith.constant 0 : i32
    %c0_i32_1 = arith.constant 0 : i32
    return %c0_i32, %c0_i32_0 : i32, i32
  }
  func.func @transform_4(%arg0: i32) -> (i32, i32) {
    %c0_i32 = arith.constant 0 : i32
    %c0_i32_0 = arith.constant 0 : i32
    %c0_i32_1 = arith.constant 0 : i32
    return %c0_i32, %c0_i32_0 : i32, i32
  }
  func.func @transform_5(%arg0: i32) -> (i32, i32) {
    %c0_i32 = arith.constant 0 : i32
    %c0_i32_0 = arith.constant 0 : i32
    %c0_i32_1 = arith.constant 0 : i32
    return %c0_i32, %c0_i32_0 : i32, i32
  }
}

</mosaic_0001>

<llo_original>
// kernel: s4_model_forward.1
$region0: #{s4_model_forward.1}
  #allocation0 [shape = 'u32[]', space=smem, size = 0x4, offset = 0x4, fixed_abs, tag = 'smem constant byte address 0x4 - core index']
  #allocation1 [shape = 'u32[72,128]{1,0:T(1,128)}', space=vmem, size = 0x9000, scoped, tag = 'internal scratch']
  %s0 = inlined_call_operand.vmem [shape: s32[16,2], index: 0, kind: input, shape index: {}]
  %s1 = inlined_call_operand.vmem [shape: bf16[128,32], index: 1, kind: input, shape index: {}]
  %s2 = inlined_call_operand.vmem [shape: bf16[32,128], index: 2, kind: input, shape index: {}]
  %s3 = inlined_call_operand.vmem [shape: f32[1,128], index: 3, kind: input, shape index: {}]
  %s4 = inlined_call_operand.hbm [shape: f32[16,128], index: 4, kind: output, shape index: {0}]
  %s5 = inlined_call_operand.vmem [shape: f32[1,128], index: 5, kind: output, shape index: {1}]
  %6 = xla_tuple %s4, %s5
  %s7 = sld [smem:[#allocation0]]
  $region34: #{s4_model_forward.1} parent=0
    _
  %s9 = ssub.s32 1, %s7
  %s10 = scalar_select 0, %s9, %s7
  $region1: #{s4_model_forward.1} parent=0
    #allocation2 [shape = 'u8[8192]{0}', space=vmem, size = 0x2000, scoped, tag = 'output window, operand 0, single buffered']
    #allocation3 [shape = 's32[1]{0}', space=sflag, size = 0x4, scoped, tag = 'scoped memory for s4_model_forward.1']
    %11 = vsyncpa [#allocation3], 0
    // Predicated region
    $region2: #{s4_model_forward.1} parent=1 // pred_check
      _
    $region3: #{s4_model_forward.1} parent=1 // pred_check_branch
      %13 = sbr.rel (0) target = $region5
    $region4: #{s4_model_forward.1} parent=1 // pred_region
      _
    $region5: #{s4_model_forward.1} parent=1 // pred_fallthru
      _
    // Predicated region
    $region6: #{s4_model_forward.1} parent=1 // pred_check
      _
    $region7: #{s4_model_forward.1} parent=1 // pred_check_branch
      %15 = sbr.rel (0) target = $region9
    $region8: #{s4_model_forward.1} parent=1 // pred_region
      _
    $region9: #{s4_model_forward.1} parent=1 // pred_fallthru
      _
    // Predicated region
    $region10: #{s4_model_forward.1} parent=1 // pred_check
      _
    $region11: #{s4_model_forward.1} parent=1 // pred_check_branch
      %17 = sbr.rel (0) target = $region13
    $region12: #{s4_model_forward.1} parent=1 // pred_region
      _
    $region13: #{s4_model_forward.1} parent=1 // pred_fallthru
      _
    // Predicated region
    $region14: #{s4_model_forward.1} parent=1 // pred_check
      _
    $region15: #{s4_model_forward.1} parent=1 // pred_check_branch
      %19 = sbr.rel (0) target = $region17
    $region16: #{s4_model_forward.1} parent=1 // pred_region
      _
    $region17: #{s4_model_forward.1} parent=1 // pred_fallthru
      _
    %v21 = vld [vmem:[%s0] sm:$0xff]
    %v22 = vld [vmem:[%s0 + $0x8] sm:$0xff]
    %v23 = vlaneseq
    %v24 = vand.u32 %v23, 127
    %25 = vset.pattern.permute.xlu0 0
    %26 = vperm.xlu0 %25, %v21
    %v27 = vpop.permute.xlu0 %26
    %28 = vset.pattern.permute.xlu0 0
    %29 = vperm.xlu0 %28, %v22
    %v30 = vpop.permute.xlu0 %29
    %vm31 = vcmp.eq.s32.totalorder %v24, %v27
    %vm32 = vcmp.eq.s32.totalorder %v24, %v30
    %v33 = vsel %vm31, 1, 0
    %v34 = vsel %vm32, 1, 0
    %v35 = vcvt.s32.f32 %v33
    %v36 = vcvt.s32.f32 %v34
    %v37 = vpack.c.bf16 %v36, %v35
    %v38 = vld [vmem:[%s1] sm:$0xf]
    %v39 = vld [vmem:[%s1 + $0x4] sm:$0xf]
    %v40 = vld [vmem:[%s1 + $0x8] sm:$0xf]
    %v41 = vld [vmem:[%s1 + $0xc] sm:$0xf]
    %v42 = vld [vmem:[%s1 + $0x10] sm:$0xf]
    %v43 = vld [vmem:[%s1 + $0x14] sm:$0xf]
    %v44 = vld [vmem:[%s1 + $0x18] sm:$0xf]
    %v45 = vld [vmem:[%s1 + $0x1c] sm:$0xf]
    %v46 = vld [vmem:[%s1 + $0x20] sm:$0xf]
    %v47 = vld [vmem:[%s1 + $0x24] sm:$0xf]
    %v48 = vld [vmem:[%s1 + $0x28] sm:$0xf]
    %v49 = vld [vmem:[%s1 + $0x2c] sm:$0xf]
    %v50 = vld [vmem:[%s1 + $0x30] sm:$0xf]
    %v51 = vld [vmem:[%s1 + $0x34] sm:$0xf]
    %v52 = vld [vmem:[%s1 + $0x38] sm:$0xf]
    %v53 = vld [vmem:[%s1 + $0x3c] sm:$0xf]
    %v70 = vunpack.c.l.b16 %v38
    %v71 = vunpack.c.l.b16 %v39
    %v72 = vunpack.c.l.b16 %v40
    %v73 = vunpack.c.l.b16 %v41
    %v74 = vunpack.c.l.b16 %v42
    %v75 = vunpack.c.l.b16 %v43
    %v76 = vunpack.c.l.b16 %v44
    %v77 = vunpack.c.l.b16 %v45
    %v78 = vunpack.c.l.b16 %v46
    %v79 = vunpack.c.l.b16 %v47
    %v80 = vunpack.c.l.b16 %v48
    %v81 = vunpack.c.l.b16 %v49
    %v82 = vunpack.c.l.b16 %v50
    %v83 = vunpack.c.l.b16 %v51
    %v84 = vunpack.c.l.b16 %v52
    %v85 = vunpack.c.l.b16 %v53
    %v86 = vpack.c.b16 %v71, %v70
    %v87 = vpack.c.b16 %v73, %v72
    %v88 = vpack.c.b16 %v75, %v74
    %v89 = vpack.c.b16 %v77, %v76
    %v90 = vpack.c.b16 %v79, %v78
    %v91 = vpack.c.b16 %v81, %v80
    %v92 = vpack.c.b16 %v83, %v82
    %v93 = vpack.c.b16 %v85, %v84
    %102 = vmatpush.bf16.msra.mxu0 %v93
    %103 = vmatpush.bf16.msra.mxu0 %v92
    %104 = vmatpush.bf16.msra.mxu0 %v91
    %105 = vmatpush.bf16.msra.mxu0 %v90
    %106 = vmatpush.bf16.msra.mxu0 %v89
    %107 = vmatpush.bf16.msra.mxu0 %v88
    %108 = vmatpush.bf16.msra.mxu0 %v87
    %109 = vmatpush.bf16.msra.mxu0 %v86
    %110 = vmatmul.bf16.gmra.mxu0 %v37
    %v111 = vpop.f32.mrf.mxu0
    %v112 = vadd.f32 0.0, %v111
    %v113 = vpop.f32.mrf.mxu0
    %v114 = vadd.f32 0.0, %v113
    %115 = vdwg.mxu0
    %v116 = vmul.f32 %v112, 5.656854
    %v117 = vmul.f32 %v114, 5.656854
    %v118 = vpack.c.bf16 %v117, %v116
    %v119 = vld [vmem:[%s2] sm:$0xf]
    %v120 = vld [vmem:[%s2 + $0x4] sm:$0xf]
    %v121 = vld [vmem:[%s2 + $0x8] sm:$0xf]
    %v122 = vld [vmem:[%s2 + $0xc] sm:$0xf]
    %v123 = vld [vmem:[%s3] sm:$0x1]
    %v125 = vperm.slane %v123, 0
    %v131 = vunpack.c.l.b16 %v119
    %v132 = vunpack.c.l.b16 %v120
    %v133 = vunpack.c.l.b16 %v121
    %v134 = vunpack.c.l.b16 %v122
    %v135 = vpack.c.b16 %v132, %v131
    %v136 = vpack.c.b16 %v134, %v133
    %vm139 = vcmask 261120
    %v141 = vsel %vm139, %v118, 0
    %143 = vmatpush.bf16.msra.mxu0 0
    %144 = vmatpush.bf16.msra.mxu0 0
    %145 = vmatpush.bf16.msra.mxu0 0
    %146 = vmatpush.bf16.msra.mxu0 0
    %147 = vmatpush.bf16.msra.mxu0 0
    %148 = vmatpush.bf16.msra.mxu0 0
    %149 = vmatpush.bf16.msra.mxu0 %v136
    %150 = vmatpush.bf16.msra.mxu0 %v135
    %151 = vmatmul.bf16.gmra.mxu0 %v141
    %v152 = vpop.f32.mrf.mxu0
    %v153 = vadd.f32 %v125, %v152
    %v154 = vpop.f32.mrf.mxu0
    %v155 = vadd.f32 %v125, %v154
    %156 = vdwg.mxu0
    %157 = vst [vmem:[#allocation2] sm:$0xff] %v153
    %158 = vst [vmem:[#allocation2 + $0x8] sm:$0xff] %v155
    %159 = vmax.xlane.f32.xlu0 %v153
    %v160 = vpop.xlane.xlu0 %159
    %161 = vmax.xlane.f32.xlu0 %v155
    %v162 = vpop.xlane.xlu0 %161
    %v163 = vsub.f32 %v153, %v160
    %v164 = vsub.f32 %v155, %v162
    %v165 = vmul.f32 %v163, 1.442695
    %v166 = vpow.pop %v165
    %v167 = vmul.f32 %v164, 1.442695
    %v168 = vpow.pop %v167
    %169 = vadd.xlane.f32.xlu0 %v166
    %v170 = vpop.xlane.xlu0 %169
    %171 = vadd.xlane.f32.xlu0 %v168
    %v172 = vpop.xlane.xlu0 %171
    %v173 = vlog2.pop %v170
    %v174 = vmul.f32 %v173, 0.6931472
    %v175 = vlog2.pop %v172
    %v176 = vmul.f32 %v175, 0.6931472
    %v177 = vadd.f32 %v160, %v174
    %v178 = vadd.f32 %v162, %v176
    %vm179 = vcmp.ne.s32.totalorder %v21, 4294967196
    %vm180 = vcmp.ne.s32.totalorder %v22, 4294967196
    %v181 = vsel %vm179, 1, 0
    %v182 = vsel %vm180, 1, 0
    %v183 = vcvt.s32.f32 %v181
    %v184 = vcvt.s32.f32 %v182
    %vm185 = vcmp.eq.s32.totalorder %v21, 4294967196
    %vm186 = vcmp.eq.s32.totalorder %v22, 4294967196
    %v187 = vsel %vm185, 0, %v21
    %v188 = vsel %vm186, 0, %v22
    %189 = vset.pattern.permute.xlu0 1
    %190 = vperm.xlu0 %189, %v187
    %v191 = vpop.permute.xlu0 %190
    %192 = vset.pattern.permute.xlu0 1
    %193 = vperm.xlu0 %192, %v188
    %v194 = vpop.permute.xlu0 %193
    %vm195 = vcmp.eq.s32.totalorder %v24, %v191
    %vm196 = vcmp.eq.s32.totalorder %v24, %v194
    %v197 = vsel %vm195, 1, 0
    %v198 = vsel %vm196, 1, 0
    %v199 = vcvt.s32.f32 %v197
    %v200 = vcvt.s32.f32 %v198
    %v201 = vmul.f32 %v199, %v153
    %v202 = vmul.f32 %v200, %v155
    %203 = vadd.xlane.f32.xlu0 %v201
    %v204 = vpop.xlane.xlu0 %203
    %205 = vadd.xlane.f32.xlu0 %v202
    %v206 = vpop.xlane.xlu0 %205
    %v207 = vsub.f32 %v177, %v204
    %v208 = vsub.f32 %v178, %v206
    %v209 = vmul.f32 %v207, %v183
    %v210 = vmul.f32 %v208, %v184
    %213 = vrot.lane.b32.xlu0 %v209, 127
    %v214 = vpop.permute.xlu0 %213
    %215 = vrot.lane.b32.xlu0 %v210, 127
    %v216 = vpop.permute.xlu0 %215
    %vm219 = vcmask 7168
    %v220 = vsel %vm219, %v214, 0.0
    %v221 = vsel %vm219, %v216, 0.0
    %v222 = vadd.f32 %v220, %v221
    %223 = vadd.xlane.f32.xlu0 %v222
    %v224 = vpop.xlane.xlu0 %223
    %v225 = vrot.slane %v224, 4
    %v226 = vadd.f32 %v224, %v225
    %v227 = vrot.slane %v226, 2
    %v228 = vadd.f32 %v226, %v227
    %v229 = vrot.slane %v228, 1
    %v230 = vadd.f32 %v228, %v229
    %s231 = vtos %v230
    %234 = vrot.lane.b32.xlu0 %v183, 127
    %v235 = vpop.permute.xlu0 %234
    %236 = vrot.lane.b32.xlu0 %v184, 127
    %v237 = vpop.permute.xlu0 %236
    %v240 = vsel %vm219, %v235, 0.0
    %v241 = vsel %vm219, %v237, 0.0
    %v242 = vadd.f32 %v240, %v241
    %243 = vadd.xlane.f32.xlu0 %v242
    %v244 = vpop.xlane.xlu0 %243
    %v245 = vrot.slane %v244, 4
    %v246 = vadd.f32 %v244, %v245
    %v247 = vrot.slane %v246, 2
    %v248 = vadd.f32 %v246, %v247
    %v249 = vrot.slane %v248, 1
    %v250 = vadd.f32 %v248, %v249
    %s251 = vtos %v250
    %vm252 = vcmp.eq.s32.totalorder %v24, 0
    %vm253 = vcmp.eq.s32.totalorder %v24, 1
    %v254 = vstv %s251
    %v255 = vsel %vm253, %v254, 0.0
    %v256 = vstv %s231
    %v257 = vsel %vm252, %v256, %v255
    %258 = vst [vmem:[%s5] sm:$0x1] %v257
    // Predicated region
    $region18: #{s4_model_forward.1} parent=1 // pred_check
      _
    $region19: #{s4_model_forward.1} parent=1 // pred_check_branch
      %260 = sbr.rel (0) target = $region21
    $region20: #{s4_model_forward.1} parent=1 // pred_region
      %262 = vsyncadd [#allocation3], 0
      %s263 = sshll.u32 [#allocation2], 4
      %s264 = int_to_ptr.vmem [resolvable:$true] %s263
      %s265 = sshll.u32 %s4, 4
      %s266 = int_to_ptr.hbm [resolvable:$true] %s265
      %271 = dma.vmem_to_hbm [thread:$0]  %s264, 256, %s266, [#allocation3], 128, 128, 8
    $region21: #{s4_model_forward.1} parent=1 // pred_fallthru
      _
    // Predicated region
    $region22: #{s4_model_forward.1} parent=1 // pred_check
      _
    $region23: #{s4_model_forward.1} parent=1 // pred_check_branch
      %273 = sbr.rel (0) target = $region25
    $region24: #{s4_model_forward.1} parent=1 // pred_region
      _
    $region25: #{s4_model_forward.1} parent=1 // pred_fallthru
      _
    // Predicated region
    $region26: #{s4_model_forward.1} parent=1 // pred_check
      _
    $region27: #{s4_model_forward.1} parent=1 // pred_check_branch
      %275 = sbr.rel (0) target = $region29
    $region28: #{s4_model_forward.1} parent=1 // pred_region
      %277 = dma.done [#allocation3], 256
    $region29: #{s4_model_forward.1} parent=1 // pred_fallthru
      _
    // Predicated region
    $region30: #{s4_model_forward.1} parent=1 // pred_check
      _
    $region31: #{s4_model_forward.1} parent=1 // pred_check_branch
      %279 = sbr.rel (0) target = $region33
    $region32: #{s4_model_forward.1} parent=1 // pred_region
      _
    $region33: #{s4_model_forward.1} parent=1 // pred_fallthru
      _
    %280 = vsyncpa [#allocation3], 1

</llo_original>
